<compile_context>
chip_gen: v5e
topology: v5e:2x2
jax: 0.10.0
libtpu: 0.0.40
codegen_flags: <defaults>
</compile_context>

<pallas_src>
import jax
import jax.numpy as jnp
from jax.experimental import pallas as pl
from jax.experimental.pallas import tpu as pltpu

_GRAY_R, _GRAY_G, _GRAY_B = 0.2989, 0.587, 0.114


def _gray(r, g, b):
    return _GRAY_R * r + _GRAY_G * g + _GRAY_B * b


def _frac(x):
    # floor-mod by 1.0; matches torch.fmod on the positive first argument and
    # python-style % for the hue shift (torchvision uses `% 1.0` there).
    return x - jnp.floor(x)


def _reciprocal(x):
    recip = getattr(pl, "reciprocal", None)
    if recip is not None:
        return recip(x)          # exact; lands on the EUP slot
    return 1.0 / x


def _hue_rotate_rgb_fast(r, g, b, hue_factor):
    """Trimmed adjust_hue math for the kernel (VALU-light, branch-free HSV->RGB).

    Mathematically identical to torchvision's rgb->hsv, h += hue (mod 1),
    hsv->rgb for inputs in [0, 1]."""
    maxc = jnp.maximum(jnp.maximum(r, g), b)
    minc = jnp.minimum(jnp.minimum(r, g), b)
    cr = maxc - minc                                  # chroma = v * s
    eqc = cr == 0.0
    inv_cr = _reciprocal(jnp.where(eqc, 1.0, cr))     # EUP, off the VALU path
    rc = (maxc - r) * inv_cr
    gc = (maxc - g) * inv_cr
    bc = (maxc - b) * inv_cr
    hr = jnp.where(maxc == r, bc - gc, 0.0)
    hg = jnp.where((maxc == g) & (maxc != r), 2.0 + rc - bc, 0.0)
    hb = jnp.where((maxc != g) & (maxc != r), 4.0 + gc - rc, 0.0)
    h = _frac((hr + hg + hb) / 6.0 + 1.0)
    h = _frac(h + hue_factor)
    h6 = h * 6.0
    v = maxc

    def channel(n):
        k = n + h6                                    # in [n, n+6)
        k = jnp.where(k >= 6.0, k - 6.0, k)           # mod 6
        w = jnp.clip(jnp.minimum(k, 4.0 - k), 0.0, 1.0)
        return v - cr * w                             # == v*(1 - s*w)

    return channel(5.0), channel(3.0), channel(1.0)


def _hue_rotate_rgb_ref(r, g, b, hue_factor):
    """torchvision-style adjust_hue (sel-based _hsv2rgb) for the pure-JAX ref."""
    maxc = jnp.maximum(jnp.maximum(r, g), b)
    minc = jnp.minimum(jnp.minimum(r, g), b)
    eqc = maxc == minc
    cr = maxc - minc
    ones = jnp.ones_like(maxc)
    s = cr / jnp.where(eqc, ones, maxc)
    inv_cr = 1.0 / jnp.where(eqc, ones, cr)
    rc = (maxc - r) * inv_cr
    gc = (maxc - g) * inv_cr
    bc = (maxc - b) * inv_cr
    hr = jnp.where(maxc == r, bc - gc, 0.0)
    hg = jnp.where((maxc == g) & (maxc != r), 2.0 + rc - bc, 0.0)
    hb = jnp.where((maxc != g) & (maxc != r), 4.0 + gc - rc, 0.0)
    h = _frac((hr + hg + hb) / 6.0 + 1.0)
    h = _frac(h + hue_factor)
    v = maxc

    h6 = h * 6.0
    i = jnp.floor(h6)
    f = h6 - i
    i = jnp.where(i >= 6.0, i - 6.0, i)
    p = jnp.clip(v * (1.0 - s), 0.0, 1.0)
    q = jnp.clip(v * (1.0 - s * f), 0.0, 1.0)
    t = jnp.clip(v * (1.0 - s * (1.0 - f)), 0.0, 1.0)

    def sel(c0, c1, c2, c3, c4, c5):
        out = jnp.where(i == 0.0, c0, 0.0)
        out = out + jnp.where(i == 1.0, c1, 0.0)
        out = out + jnp.where(i == 2.0, c2, 0.0)
        out = out + jnp.where(i == 3.0, c3, 0.0)
        out = out + jnp.where(i == 4.0, c4, 0.0)
        out = out + jnp.where(i == 5.0, c5, 0.0)
        return out

    return sel(v, q, p, p, t, v), sel(t, v, v, q, p, p), sel(p, p, t, v, v, q)


def _make_kernel(order, enabled, hw_padded, inv_hw):
    """Fused per-batch-chunk kernel; random order / enabled flags are static."""

    def kernel(params_ref, x_ref, o_ref):
        # x_ref / o_ref: (bs, 3*hw_padded) lane-dense block; params_ref: (4,) SMEM.
        r = x_ref[:, 0:hw_padded].astype(jnp.float32)              # (bs, HWp)
        g = x_ref[:, hw_padded:2 * hw_padded].astype(jnp.float32)
        b = x_ref[:, 2 * hw_padded:3 * hw_padded].astype(jnp.float32)

        # "excluding mask": remember which elements were exactly 0 so the
        # originals are dead after this point (less live-range pressure).
        m_r = r == 0.0
        m_g = g == 0.0
        m_b = b == 0.0

        bf = params_ref[0]
        cf = params_ref[1]
        sf = params_ref[2]
        hf = params_ref[3]

        for fn_id in order:                          # static trace-time composition
            if fn_id == 0 and enabled[0]:            # brightness
                r = jnp.clip(r * bf, 0.0, 1.0)
                g = jnp.clip(g * bf, 0.0, 1.0)
                b = jnp.clip(b * bf, 0.0, 1.0)
            elif fn_id == 1 and enabled[1]:          # contrast (per-sample gray mean)
                gray = _gray(r, g, b)                                  # (bs, HWp)
                # zero-padded pixels add 0 to the sum; inv_hw uses the true HW
                m = jnp.sum(gray, axis=-1, keepdims=True) * inv_hw     # (bs, 1)
                r = jnp.clip(cf * r + (1.0 - cf) * m, 0.0, 1.0)
                g = jnp.clip(cf * g + (1.0 - cf) * m, 0.0, 1.0)
                b = jnp.clip(cf * b + (1.0 - cf) * m, 0.0, 1.0)
            elif fn_id == 2 and enabled[2]:          # saturation (per-pixel gray)
                gray = _gray(r, g, b)
                r = jnp.clip(sf * r + (1.0 - sf) * gray, 0.0, 1.0)
                g = jnp.clip(sf * g + (1.0 - sf) * gray, 0.0, 1.0)
                b = jnp.clip(sf * b + (1.0 - sf) * gray, 0.0, 1.0)
            elif fn_id == 3 and enabled[3]:          # hue
                r, g, b = _hue_rotate_rgb_fast(r, g, b, hf)

        # elements that were exactly 0 stay untouched (come back as 0)
        o_ref[:, 0:hw_padded] = jnp.where(m_r, 0.0, r).astype(o_ref.dtype)
        o_ref[:, hw_padded:2 * hw_padded] = jnp.where(m_g, 0.0, g).astype(o_ref.dtype)
        o_ref[:, 2 * hw_padded:3 * hw_padded] = jnp.where(m_b, 0.0, b).astype(o_ref.dtype)

    return kernel


def _vmem_capacity_bytes():
    try:
        cap = getattr(pltpu.get_tpu_info(), "vmem_capacity_bytes", None)
        if cap:
            return int(cap)
    except Exception:
        pass
    return 64 << 20  # conservative (v7x per-TC)


def _pick_batch_block(batch, sample_bytes, block_budget, min_steps=4):
    """Pick the batch chunk bs (multiple of 8, or == batch) such that
    2 in + 2 out double-buffered blocks stay within the VMEM budget,
    preferring >=min_steps (even) grid steps for per-TC pipelining."""
    cands = list(range(8, batch + 1, 8))
    if batch not in cands:
        cands.append(batch)
    fitting = [c for c in cands if c * sample_bytes <= block_budget]
    if not fitting:
        # TODO(synk): fall back to spatial (lane-chunk) tiling when even the
        # smallest legal batch block exceeds the VMEM budget.
        return min(cands)

    def steps(c):
        return -(-batch // c)

    deep_even = [c for c in fitting if steps(c) >= min_steps and steps(c) % 2 == 0]
    if deep_even:
        return max(deep_even)
    deep = [c for c in fitting if steps(c) >= min_steps]
    if deep:
        return max(deep)
    return max(fitting)


def color_jitter_excluding_mask(x, fn_order, brightness_factor, contrast_factor,
                                saturation_factor, hue_factor):
    """Applies ColorJitterExcludingMask.forward for the given (already drawn)
    random order and factors. x: float RGB batch, NCHW, values in [0, 1]."""
    B, C, H, W = x.shape
    if C != 3:
        raise ValueError("color jitter expects 3-channel (RGB) images")
    HW = H * W
    HWp = ((HW + 127) // 128) * 128        # 128-aligned lane slabs per channel

    # lane-dense layout: (B, C*HWp), each channel a contiguous 128-aligned slab
    x2 = x.reshape(B, C, HW)
    if HWp != HW:
        x2 = jnp.pad(x2, ((0, 0), (0, 0), (0, HWp - HW)))
    x2 = x2.reshape(B, C * HWp)

    enabled = (brightness_factor is not None, contrast_factor is not None,
               saturation_factor is not None, hue_factor is not None)
    params = jnp.array([
        brightness_factor if enabled[0] else 1.0,
        contrast_factor if enabled[1] else 1.0,
        saturation_factor if enabled[2] else 1.0,
        hue_factor if enabled[3] else 0.0,
    ], dtype=jnp.float32)

    # VMEM budget: 2 input + 2 output double-buffered blocks plus headroom.
    vmem_limit = min(_vmem_capacity_bytes() // 2, 64 << 20)
    block_budget = vmem_limit // 5
    sample_bytes = C * HWp * x2.dtype.itemsize
    bs = _pick_batch_block(B, sample_bytes, block_budget)
    grid = (pl.cdiv(B, bs),)

    kernel = _make_kernel(tuple(int(i) for i in fn_order), enabled,
                          HWp, 1.0 / float(HW))

    out = pl.pallas_call(
        kernel,
        out_shape=jax.ShapeDtypeStruct((B, C * HWp), x2.dtype),
        grid=grid,
        in_specs=[
            pl.BlockSpec((4,), lambda i: (0,),
                         memory_space=pltpu.MemorySpace.SMEM),
            pl.BlockSpec((bs, C * HWp), lambda i: (i, 0)),
        ],
        out_specs=pl.BlockSpec((bs, C * HWp), lambda i: (i, 0)),
        input_output_aliases={1: 0},   # jitter "in place": no 2nd HBM buffer
        compiler_params=pltpu.CompilerParams(
            dimension_semantics=("parallel",),
            vmem_limit_bytes=vmem_limit,
        ),
    )(params, x2)

    out = out.reshape(B, C, HWp)
    if HWp != HW:
        out = out[:, :, :HW]
    return out.reshape(B, C, H, W)


def _ref_color_jitter_excluding_mask(x, fn_order, bf, cf, sf, hf):
    """Pure-JAX mirror of the torchvision float-tensor path (independent math)."""
    orig = x
    img = x.astype(jnp.float32)
    _, _, H, W = x.shape
    inv_hw = 1.0 / float(H * W)

    def gray(im):
        return _GRAY_R * im[:, 0:1] + _GRAY_G * im[:, 1:2] + _GRAY_B * im[:, 2:3]

    for fn_id in fn_order:
        fn_id = int(fn_id)
        if fn_id == 0 and bf is not None:
            img = jnp.clip(img * bf, 0.0, 1.0)
        elif fn_id == 1 and cf is not None:
            m = jnp.sum(gray(img), axis=(-2, -1), keepdims=True) * inv_hw
            img = jnp.clip(cf * img + (1.0 - cf) * m, 0.0, 1.0)
        elif fn_id == 2 and sf is not None:
            img = jnp.clip(sf * img + (1.0 - sf) * gray(img), 0.0, 1.0)
        elif fn_id == 3 and hf is not None:
            r, g, b = _hue_rotate_rgb_ref(img[:, 0], img[:, 1], img[:, 2], hf)
            img = jnp.stack([r, g, b], axis=1)
    return jnp.where(orig == 0, orig, img.astype(x.dtype))


if __name__ == "__main__":
    key = jax.random.PRNGKey(0)
    B, C, H, W = 2, 3, 16, 16
    k_img, k_mask, k_perm, kb, kc, ks, kh = jax.random.split(key, 7)

    x = jax.random.uniform(k_img, (B, C, H, W), dtype=jnp.float32,
                           minval=0.0, maxval=1.0)
    # exact-zero "mask" region that the jitter must leave untouched
    mask = jax.random.uniform(k_mask, (B, 1, H, W)) < 0.2
    x = jnp.where(mask, 0.0, x)

    # ColorJitterExcludingMask(brightness=0.4, contrast=0.4, saturation=0.4, hue=0.1)
    brightness, contrast, saturation, hue = 0.4, 0.4, 0.4, 0.1
    # get_params(): random application order + uniform factors (host-side)
    fn_order = [int(i) for i in jax.random.permutation(k_perm, 4)]
    bf = float(jax.random.uniform(kb, (), minval=max(0.0, 1.0 - brightness),
                                  maxval=1.0 + brightness))
    cf = float(jax.random.uniform(kc, (), minval=max(0.0, 1.0 - contrast),
                                  maxval=1.0 + contrast))
    sf = float(jax.random.uniform(ks, (), minval=max(0.0, 1.0 - saturation),
                                  maxval=1.0 + saturation))
    hf = float(jax.random.uniform(kh, (), minval=-hue, maxval=hue))

    ref = _ref_color_jitter_excluding_mask(x, fn_order, bf, cf, sf, hf)
    out = jax.block_until_ready(
        color_jitter_excluding_mask(x, fn_order, bf, cf, sf, hf))

    assert out.shape == x.shape and out.dtype == x.dtype
    assert jnp.allclose(out, ref, atol=1e-5, rtol=1e-5), \
        float(jnp.max(jnp.abs(out - ref)))
    # originally-zero (masked) elements must come back exactly zero
    mask_full = jnp.broadcast_to(mask, x.shape)
    assert bool(jnp.all(jnp.where(mask_full, out == 0.0, True)))
    print("KERNEL_OK")
</pallas_src>

<mosaic_0001>
module attributes {stable_mosaic.version = 11 : i64} {
  func.func @kernel(%arg0: i32, %arg1: memref<4xf32, #tpu.memory_space<smem>>, %arg2: memref<2x768xf32, #tpu.memory_space<vmem>>, %arg3: memref<2x768xf32, #tpu.memory_space<vmem>>) attributes {dimension_semantics = [#tpu.dimension_semantics<parallel>], iteration_bounds = array<i64: 1>, scalar_prefetch = 0 : i64, scratch_operands = 0 : i64, tpu.core_type = #tpu.core_type<tc>, window_params = [{transform_indices = @transform_0, window_bounds = array<i64: 4>}, {transform_indices = @transform_1, window_bounds = array<i64: 2, 768>}, {transform_indices = @transform_2, window_bounds = array<i64: 2, 768>}]} {
    %c0 = arith.constant 0 : index
    %c0_0 = arith.constant 0 : index
    %0 = vector.load %arg2[%c0, %c0_0] : memref<2x768xf32, #tpu.memory_space<vmem>>, vector<2x256xf32>
    %c0_1 = arith.constant 0 : index
    %c256 = arith.constant 256 : index
    %1 = vector.load %arg2[%c0_1, %c256] : memref<2x768xf32, #tpu.memory_space<vmem>>, vector<2x256xf32>
    %c0_2 = arith.constant 0 : index
    %c512 = arith.constant 512 : index
    %2 = vector.load %arg2[%c0_2, %c512] : memref<2x768xf32, #tpu.memory_space<vmem>>, vector<2x256xf32>
    %cst = arith.constant 0.000000e+00 : f32
    %3 = vector.broadcast %cst : f32 to vector<2x256xf32>
    %4 = arith.cmpf oeq, %0, %3 : vector<2x256xf32>
    %cst_3 = arith.constant 0.000000e+00 : f32
    %5 = vector.broadcast %cst_3 : f32 to vector<2x256xf32>
    %6 = arith.cmpf oeq, %1, %5 : vector<2x256xf32>
    %cst_4 = arith.constant 0.000000e+00 : f32
    %7 = vector.broadcast %cst_4 : f32 to vector<2x256xf32>
    %8 = arith.cmpf oeq, %2, %7 : vector<2x256xf32>
    %c0_5 = arith.constant 0 : index
    %9 = memref.load %arg1[%c0_5] : memref<4xf32, #tpu.memory_space<smem>>
    %c1 = arith.constant 1 : index
    %10 = memref.load %arg1[%c1] : memref<4xf32, #tpu.memory_space<smem>>
    %c2 = arith.constant 2 : index
    %11 = memref.load %arg1[%c2] : memref<4xf32, #tpu.memory_space<smem>>
    %c3 = arith.constant 3 : index
    %12 = memref.load %arg1[%c3] : memref<4xf32, #tpu.memory_space<smem>>
    %13 = arith.maximumf %0, %1 : vector<2x256xf32>
    %14 = arith.maximumf %13, %2 : vector<2x256xf32>
    %15 = arith.minimumf %0, %1 : vector<2x256xf32>
    %16 = arith.minimumf %15, %2 : vector<2x256xf32>
    %17 = arith.subf %14, %16 : vector<2x256xf32>
    %cst_6 = arith.constant 0.000000e+00 : f32
    %18 = vector.broadcast %cst_6 : f32 to vector<2x256xf32>
    %19 = arith.cmpf oeq, %17, %18 : vector<2x256xf32>
    %cst_7 = arith.constant 1.000000e+00 : f32
    %20 = vector.broadcast %cst_7 : f32 to vector<2x256xf32>
    %21 = arith.select %19, %20, %17 : vector<2x256xi1>, vector<2x256xf32>
    %22 = tpu.reciprocal %21 : vector<2x256xf32> -> vector<2x256xf32>
    %23 = arith.subf %14, %0 : vector<2x256xf32>
    %24 = arith.mulf %23, %22 : vector<2x256xf32>
    %25 = arith.subf %14, %1 : vector<2x256xf32>
    %26 = arith.mulf %25, %22 : vector<2x256xf32>
    %27 = arith.subf %14, %2 : vector<2x256xf32>
    %28 = arith.mulf %27, %22 : vector<2x256xf32>
    %29 = arith.cmpf oeq, %14, %0 : vector<2x256xf32>
    %30 = arith.subf %28, %26 : vector<2x256xf32>
    %cst_8 = arith.constant 0.000000e+00 : f32
    %31 = vector.broadcast %cst_8 : f32 to vector<2x256xf32>
    %32 = arith.select %29, %30, %31 : vector<2x256xi1>, vector<2x256xf32>
    %33 = arith.cmpf oeq, %14, %1 : vector<2x256xf32>
    %34 = arith.cmpf one, %14, %0 : vector<2x256xf32>
    %35 = arith.andi %33, %34 : vector<2x256xi1>
    %cst_9 = arith.constant 2.000000e+00 : f32
    %36 = vector.broadcast %cst_9 : f32 to vector<2x256xf32>
    %37 = arith.addf %36, %24 : vector<2x256xf32>
    %38 = arith.subf %37, %28 : vector<2x256xf32>
    %cst_10 = arith.constant 0.000000e+00 : f32
    %39 = vector.broadcast %cst_10 : f32 to vector<2x256xf32>
    %40 = arith.select %35, %38, %39 : vector<2x256xi1>, vector<2x256xf32>
    %41 = arith.cmpf one, %14, %1 : vector<2x256xf32>
    %42 = arith.cmpf one, %14, %0 : vector<2x256xf32>
    %43 = arith.andi %41, %42 : vector<2x256xi1>
    %cst_11 = arith.constant 4.000000e+00 : f32
    %44 = vector.broadcast %cst_11 : f32 to vector<2x256xf32>
    %45 = arith.addf %44, %26 : vector<2x256xf32>
    %46 = arith.subf %45, %24 : vector<2x256xf32>
    %cst_12 = arith.constant 0.000000e+00 : f32
    %47 = vector.broadcast %cst_12 : f32 to vector<2x256xf32>
    %48 = arith.select %43, %46, %47 : vector<2x256xi1>, vector<2x256xf32>
    %49 = arith.addf %32, %40 : vector<2x256xf32>
    %50 = arith.addf %49, %48 : vector<2x256xf32>
    %cst_13 = arith.constant 6.000000e+00 : f32
    %51 = vector.broadcast %cst_13 : f32 to vector<2x256xf32>
    %52 = arith.divf %50, %51 : vector<2x256xf32>
    %cst_14 = arith.constant 1.000000e+00 : f32
    %53 = vector.broadcast %cst_14 : f32 to vector<2x256xf32>
    %54 = arith.addf %52, %53 : vector<2x256xf32>
    %55 = math.floor %54 : vector<2x256xf32>
    %56 = arith.subf %54, %55 : vector<2x256xf32>
    %57 = vector.broadcast %12 : f32 to vector<2x256xf32>
    %58 = arith.addf %56, %57 : vector<2x256xf32>
    %59 = math.floor %58 : vector<2x256xf32>
    %60 = arith.subf %58, %59 : vector<2x256xf32>
    %cst_15 = arith.constant 6.000000e+00 : f32
    %61 = vector.broadcast %cst_15 : f32 to vector<2x256xf32>
    %62 = arith.mulf %60, %61 : vector<2x256xf32>
    %cst_16 = arith.constant 5.000000e+00 : f32
    %63 = vector.broadcast %cst_16 : f32 to vector<2x256xf32>
    %64 = arith.addf %63, %62 : vector<2x256xf32>
    %cst_17 = arith.constant 6.000000e+00 : f32
    %65 = vector.broadcast %cst_17 : f32 to vector<2x256xf32>
    %66 = arith.cmpf oge, %64, %65 : vector<2x256xf32>
    %cst_18 = arith.constant 6.000000e+00 : f32
    %67 = vector.broadcast %cst_18 : f32 to vector<2x256xf32>
    %68 = arith.subf %64, %67 : vector<2x256xf32>
    %69 = arith.select %66, %68, %64 : vector<2x256xi1>, vector<2x256xf32>
    %cst_19 = arith.constant 4.000000e+00 : f32
    %70 = vector.broadcast %cst_19 : f32 to vector<2x256xf32>
    %71 = arith.subf %70, %69 : vector<2x256xf32>
    %72 = arith.minimumf %69, %71 : vector<2x256xf32>
    %cst_20 = arith.constant 0.000000e+00 : f32
    %cst_21 = arith.constant 1.000000e+00 : f32
    %73 = vector.broadcast %cst_20 : f32 to vector<2x256xf32>
    %74 = arith.maximumf %73, %72 : vector<2x256xf32>
    %75 = vector.broadcast %cst_21 : f32 to vector<2x256xf32>
    %76 = arith.minimumf %75, %74 : vector<2x256xf32>
    %77 = arith.mulf %17, %76 : vector<2x256xf32>
    %78 = arith.subf %14, %77 : vector<2x256xf32>
    %cst_22 = arith.constant 3.000000e+00 : f32
    %79 = vector.broadcast %cst_22 : f32 to vector<2x256xf32>
    %80 = arith.addf %79, %62 : vector<2x256xf32>
    %cst_23 = arith.constant 6.000000e+00 : f32
    %81 = vector.broadcast %cst_23 : f32 to vector<2x256xf32>
    %82 = arith.cmpf oge, %80, %81 : vector<2x256xf32>
    %cst_24 = arith.constant 6.000000e+00 : f32
    %83 = vector.broadcast %cst_24 : f32 to vector<2x256xf32>
    %84 = arith.subf %80, %83 : vector<2x256xf32>
    %85 = arith.select %82, %84, %80 : vector<2x256xi1>, vector<2x256xf32>
    %cst_25 = arith.constant 4.000000e+00 : f32
    %86 = vector.broadcast %cst_25 : f32 to vector<2x256xf32>
    %87 = arith.subf %86, %85 : vector<2x256xf32>
    %88 = arith.minimumf %85, %87 : vector<2x256xf32>
    %cst_26 = arith.constant 0.000000e+00 : f32
    %cst_27 = arith.constant 1.000000e+00 : f32
    %89 = vector.broadcast %cst_26 : f32 to vector<2x256xf32>
    %90 = arith.maximumf %89, %88 : vector<2x256xf32>
    %91 = vector.broadcast %cst_27 : f32 to vector<2x256xf32>
    %92 = arith.minimumf %91, %90 : vector<2x256xf32>
    %93 = arith.mulf %17, %92 : vector<2x256xf32>
    %94 = arith.subf %14, %93 : vector<2x256xf32>
    %cst_28 = arith.constant 1.000000e+00 : f32
    %95 = vector.broadcast %cst_28 : f32 to vector<2x256xf32>
    %96 = arith.addf %95, %62 : vector<2x256xf32>
    %cst_29 = arith.constant 6.000000e+00 : f32
    %97 = vector.broadcast %cst_29 : f32 to vector<2x256xf32>
    %98 = arith.cmpf oge, %96, %97 : vector<2x256xf32>
    %cst_30 = arith.constant 6.000000e+00 : f32
    %99 = vector.broadcast %cst_30 : f32 to vector<2x256xf32>
    %100 = arith.subf %96, %99 : vector<2x256xf32>
    %101 = arith.select %98, %100, %96 : vector<2x256xi1>, vector<2x256xf32>
    %cst_31 = arith.constant 4.000000e+00 : f32
    %102 = vector.broadcast %cst_31 : f32 to vector<2x256xf32>
    %103 = arith.subf %102, %101 : vector<2x256xf32>
    %104 = arith.minimumf %101, %103 : vector<2x256xf32>
    %cst_32 = arith.constant 0.000000e+00 : f32
    %cst_33 = arith.constant 1.000000e+00 : f32
    %105 = vector.broadcast %cst_32 : f32 to vector<2x256xf32>
    %106 = arith.maximumf %105, %104 : vector<2x256xf32>
    %107 = vector.broadcast %cst_33 : f32 to vector<2x256xf32>
    %108 = arith.minimumf %107, %106 : vector<2x256xf32>
    %109 = arith.mulf %17, %108 : vector<2x256xf32>
    %110 = arith.subf %14, %109 : vector<2x256xf32>
    %cst_34 = arith.constant 2.989000e-01 : f32
    %111 = vector.broadcast %cst_34 : f32 to vector<2x256xf32>
    %112 = arith.mulf %111, %78 : vector<2x256xf32>
    %cst_35 = arith.constant 5.870000e-01 : f32
    %113 = vector.broadcast %cst_35 : f32 to vector<2x256xf32>
    %114 = arith.mulf %113, %94 : vector<2x256xf32>
    %115 = arith.addf %112, %114 : vector<2x256xf32>
    %cst_36 = arith.constant 1.140000e-01 : f32
    %116 = vector.broadcast %cst_36 : f32 to vector<2x256xf32>
    %117 = arith.mulf %116, %110 : vector<2x256xf32>
    %118 = arith.addf %115, %117 : vector<2x256xf32>
    %cst_37 = arith.constant dense<0.000000e+00> : vector<2xf32>
    %119 = vector.multi_reduction <add>, %118, %cst_37 [1] : vector<2x256xf32> to vector<2xf32>
    %120 = vector.shape_cast %119 : vector<2xf32> to vector<2x1xf32>
    %cst_38 = arith.constant 3.906250e-03 : f32
    %121 = vector.broadcast %cst_38 : f32 to vector<2x1xf32>
    %122 = arith.mulf %120, %121 : vector<2x1xf32>
    %123 = vector.broadcast %10 : f32 to vector<2x256xf32>
    %124 = arith.mulf %123, %78 : vector<2x256xf32>
    %cst_39 = arith.constant 1.000000e+00 : f32
    %125 = arith.subf %cst_39, %10 : f32
    %126 = vector.broadcast %125 : f32 to vector<2x1xf32>
    %127 = arith.mulf %126, %122 : vector<2x1xf32>
    %128 = vector.broadcast %127 : vector<2x1xf32> to vector<2x256xf32>
    %129 = arith.addf %124, %128 : vector<2x256xf32>
    %cst_40 = arith.constant 0.000000e+00 : f32
    %cst_41 = arith.constant 1.000000e+00 : f32
    %130 = vector.broadcast %cst_40 : f32 to vector<2x256xf32>
    %131 = arith.maximumf %130, %129 : vector<2x256xf32>
    %132 = vector.broadcast %cst_41 : f32 to vector<2x256xf32>
    %133 = arith.minimumf %132, %131 : vector<2x256xf32>
    %134 = vector.broadcast %10 : f32 to vector<2x256xf32>
    %135 = arith.mulf %134, %94 : vector<2x256xf32>
    %cst_42 = arith.constant 1.000000e+00 : f32
    %136 = arith.subf %cst_42, %10 : f32
    %137 = vector.broadcast %136 : f32 to vector<2x1xf32>
    %138 = arith.mulf %137, %122 : vector<2x1xf32>
    %139 = vector.broadcast %138 : vector<2x1xf32> to vector<2x256xf32>
    %140 = arith.addf %135, %139 : vector<2x256xf32>
    %cst_43 = arith.constant 0.000000e+00 : f32
    %cst_44 = arith.constant 1.000000e+00 : f32
    %141 = vector.broadcast %cst_43 : f32 to vector<2x256xf32>
    %142 = arith.maximumf %141, %140 : vector<2x256xf32>
    %143 = vector.broadcast %cst_44 : f32 to vector<2x256xf32>
    %144 = arith.minimumf %143, %142 : vector<2x256xf32>
    %145 = vector.broadcast %10 : f32 to vector<2x256xf32>
    %146 = arith.mulf %145, %110 : vector<2x256xf32>
    %cst_45 = arith.constant 1.000000e+00 : f32
    %147 = arith.subf %cst_45, %10 : f32
    %148 = vector.broadcast %147 : f32 to vector<2x1xf32>
    %149 = arith.mulf %148, %122 : vector<2x1xf32>
    %150 = vector.broadcast %149 : vector<2x1xf32> to vector<2x256xf32>
    %151 = arith.addf %146, %150 : vector<2x256xf32>
    %cst_46 = arith.constant 0.000000e+00 : f32
    %cst_47 = arith.constant 1.000000e+00 : f32
    %152 = vector.broadcast %cst_46 : f32 to vector<2x256xf32>
    %153 = arith.maximumf %152, %151 : vector<2x256xf32>
    %154 = vector.broadcast %cst_47 : f32 to vector<2x256xf32>
    %155 = arith.minimumf %154, %153 : vector<2x256xf32>
    %156 = vector.broadcast %9 : f32 to vector<2x256xf32>
    %157 = arith.mulf %133, %156 : vector<2x256xf32>
    %cst_48 = arith.constant 0.000000e+00 : f32
    %cst_49 = arith.constant 1.000000e+00 : f32
    %158 = vector.broadcast %cst_48 : f32 to vector<2x256xf32>
    %159 = arith.maximumf %158, %157 : vector<2x256xf32>
    %160 = vector.broadcast %cst_49 : f32 to vector<2x256xf32>
    %161 = arith.minimumf %160, %159 : vector<2x256xf32>
    %162 = vector.broadcast %9 : f32 to vector<2x256xf32>
    %163 = arith.mulf %144, %162 : vector<2x256xf32>
    %cst_50 = arith.constant 0.000000e+00 : f32
    %cst_51 = arith.constant 1.000000e+00 : f32
    %164 = vector.broadcast %cst_50 : f32 to vector<2x256xf32>
    %165 = arith.maximumf %164, %163 : vector<2x256xf32>
    %166 = vector.broadcast %cst_51 : f32 to vector<2x256xf32>
    %167 = arith.minimumf %166, %165 : vector<2x256xf32>
    %168 = vector.broadcast %9 : f32 to vector<2x256xf32>
    %169 = arith.mulf %155, %168 : vector<2x256xf32>
    %cst_52 = arith.constant 0.000000e+00 : f32
    %cst_53 = arith.constant 1.000000e+00 : f32
    %170 = vector.broadcast %cst_52 : f32 to vector<2x256xf32>
    %171 = arith.maximumf %170, %169 : vector<2x256xf32>
    %172 = vector.broadcast %cst_53 : f32 to vector<2x256xf32>
    %173 = arith.minimumf %172, %171 : vector<2x256xf32>
    %cst_54 = arith.constant 2.989000e-01 : f32
    %174 = vector.broadcast %cst_54 : f32 to vector<2x256xf32>
    %175 = arith.mulf %174, %161 : vector<2x256xf32>
    %cst_55 = arith.constant 5.870000e-01 : f32
    %176 = vector.broadcast %cst_55 : f32 to vector<2x256xf32>
    %177 = arith.mulf %176, %167 : vector<2x256xf32>
    %178 = arith.addf %175, %177 : vector<2x256xf32>
    %cst_56 = arith.constant 1.140000e-01 : f32
    %179 = vector.broadcast %cst_56 : f32 to vector<2x256xf32>
    %180 = arith.mulf %179, %173 : vector<2x256xf32>
    %181 = arith.addf %178, %180 : vector<2x256xf32>
    %182 = vector.broadcast %11 : f32 to vector<2x256xf32>
    %183 = arith.mulf %182, %161 : vector<2x256xf32>
    %cst_57 = arith.constant 1.000000e+00 : f32
    %184 = arith.subf %cst_57, %11 : f32
    %185 = vector.broadcast %184 : f32 to vector<2x256xf32>
    %186 = arith.mulf %185, %181 : vector<2x256xf32>
    %187 = arith.addf %183, %186 : vector<2x256xf32>
    %cst_58 = arith.constant 0.000000e+00 : f32
    %cst_59 = arith.constant 1.000000e+00 : f32
    %188 = vector.broadcast %cst_58 : f32 to vector<2x256xf32>
    %189 = arith.maximumf %188, %187 : vector<2x256xf32>
    %190 = vector.broadcast %cst_59 : f32 to vector<2x256xf32>
    %191 = arith.minimumf %190, %189 : vector<2x256xf32>
    %192 = vector.broadcast %11 : f32 to vector<2x256xf32>
    %193 = arith.mulf %192, %167 : vector<2x256xf32>
    %cst_60 = arith.constant 1.000000e+00 : f32
    %194 = arith.subf %cst_60, %11 : f32
    %195 = vector.broadcast %194 : f32 to vector<2x256xf32>
    %196 = arith.mulf %195, %181 : vector<2x256xf32>
    %197 = arith.addf %193, %196 : vector<2x256xf32>
    %cst_61 = arith.constant 0.000000e+00 : f32
    %cst_62 = arith.constant 1.000000e+00 : f32
    %198 = vector.broadcast %cst_61 : f32 to vector<2x256xf32>
    %199 = arith.maximumf %198, %197 : vector<2x256xf32>
    %200 = vector.broadcast %cst_62 : f32 to vector<2x256xf32>
    %201 = arith.minimumf %200, %199 : vector<2x256xf32>
    %202 = vector.broadcast %11 : f32 to vector<2x256xf32>
    %203 = arith.mulf %202, %173 : vector<2x256xf32>
    %cst_63 = arith.constant 1.000000e+00 : f32
    %204 = arith.subf %cst_63, %11 : f32
    %205 = vector.broadcast %204 : f32 to vector<2x256xf32>
    %206 = arith.mulf %205, %181 : vector<2x256xf32>
    %207 = arith.addf %203, %206 : vector<2x256xf32>
    %cst_64 = arith.constant 0.000000e+00 : f32
    %cst_65 = arith.constant 1.000000e+00 : f32
    %208 = vector.broadcast %cst_64 : f32 to vector<2x256xf32>
    %209 = arith.maximumf %208, %207 : vector<2x256xf32>
    %210 = vector.broadcast %cst_65 : f32 to vector<2x256xf32>
    %211 = arith.minimumf %210, %209 : vector<2x256xf32>
    %cst_66 = arith.constant 0.000000e+00 : f32
    %212 = vector.broadcast %cst_66 : f32 to vector<2x256xf32>
    %213 = arith.select %4, %212, %191 : vector<2x256xi1>, vector<2x256xf32>
    %c0_67 = arith.constant 0 : index
    %c0_68 = arith.constant 0 : index
    %214 = vector.load %arg3[%c0_67, %c0_68] : memref<2x768xf32, #tpu.memory_space<vmem>>, vector<2x256xf32>
    tpu.vector_store %arg3[%c0_67, %c0_68], %213 {strides = array<i32>} : memref<2x768xf32, #tpu.memory_space<vmem>>, vector<2x256xf32>,
    %cst_69 = arith.constant 0.000000e+00 : f32
    %215 = vector.broadcast %cst_69 : f32 to vector<2x256xf32>
    %216 = arith.select %6, %215, %201 : vector<2x256xi1>, vector<2x256xf32>
    %c0_70 = arith.constant 0 : index
    %c256_71 = arith.constant 256 : index
    %217 = vector.load %arg3[%c0_70, %c256_71] : memref<2x768xf32, #tpu.memory_space<vmem>>, vector<2x256xf32>
    tpu.vector_store %arg3[%c0_70, %c256_71], %216 {strides = array<i32>} : memref<2x768xf32, #tpu.memory_space<vmem>>, vector<2x256xf32>,
    %cst_72 = arith.constant 0.000000e+00 : f32
    %218 = vector.broadcast %cst_72 : f32 to vector<2x256xf32>
    %219 = arith.select %8, %218, %211 : vector<2x256xi1>, vector<2x256xf32>
    %c0_73 = arith.constant 0 : index
    %c512_74 = arith.constant 512 : index
    %220 = vector.load %arg3[%c0_73, %c512_74] : memref<2x768xf32, #tpu.memory_space<vmem>>, vector<2x256xf32>
    tpu.vector_store %arg3[%c0_73, %c512_74], %219 {strides = array<i32>} : memref<2x768xf32, #tpu.memory_space<vmem>>, vector<2x256xf32>,
    return
  }
  func.func @transform_0(%arg0: i32) -> i32 {
    %c0_i32 = arith.constant 0 : i32
    %c0_i32_0 = arith.constant 0 : i32
    return %c0_i32 : i32
  }
  func.func @transform_1(%arg0: i32) -> (i32, i32) {
    %c0_i32 = arith.constant 0 : i32
    %c0_i32_0 = arith.constant 0 : i32
    return %arg0, %c0_i32 : i32, i32
  }
  func.func @transform_2(%arg0: i32) -> (i32, i32) {
    %c0_i32 = arith.constant 0 : i32
    %c0_i32_0 = arith.constant 0 : i32
    return %arg0, %c0_i32 : i32, i32
  }
}

</mosaic_0001>

<llo_original>
// kernel: tpu_custom_call.1
$region0: #{tpu_custom_call.1}
  #allocation0 [shape = 'u32[]', space=smem, size = 0x4, offset = 0x4, fixed_abs, tag = 'smem constant byte address 0x4 - core index']
  #allocation1 [shape = 'u32[72,128]{1,0:T(1,128)}', space=vmem, size = 0x9000, scoped, tag = 'internal scratch']
  %s0 = inlined_call_operand.vmem [shape: f32[4], index: 0, kind: input, shape index: {}]
  %s1 = inlined_call_operand.hbm [shape: f32[2,768], index: 1, kind: input, shape index: {}, may-alias: {1,2}]
  %s2 = inlined_call_operand.hbm [shape: f32[2,768], index: 2, kind: output, shape index: {}, may-alias: {1,2}]
  %s3 = sld [smem:[#allocation0]]
  $region26: #{tpu_custom_call.1} parent=0
    _
  %s5 = ssub.s32 1, %s3
  %s6 = scalar_select 0, %s5, %s3
  $region1: #{tpu_custom_call.1} parent=0
    #allocation2 [shape = 'u8[512]{0}', space=smem, size = 0x200, scoped, tag = 'input window, operand 0, single buffered']
    #allocation3 [shape = 's32[1]{0}', space=sflag, size = 0x4, scoped, tag = 'scoped memory for tpu_custom_call.1']
    #allocation4 [shape = 's32[1]{0}', space=sflag, size = 0x4, scoped, tag = 'scoped memory for tpu_custom_call.1']
    #allocation5 [shape = 's32[1]{0}', space=sflag, size = 0x4, scoped, tag = 'scoped memory for tpu_custom_call.1']
    #allocation6 [shape = 'u8[6144]{0}', space=vmem, size = 0x1800, scoped, tag = 'input window, operand 1, single buffered']
    #allocation7 [shape = 'u8[6144]{0}', space=vmem, size = 0x1800, scoped, tag = 'output window, operand 0, single buffered']
    %7 = vsyncpa [#allocation5], 0
    %8 = vsyncpa [#allocation3], 0
    %9 = vsyncpa [#allocation4], 0
    // Predicated region
    $region2: #{tpu_custom_call.1} parent=1 // pred_check
      _
    $region3: #{tpu_custom_call.1} parent=1 // pred_check_branch
      %11 = sbr.rel (0) target = $region5
    $region4: #{tpu_custom_call.1} parent=1 // pred_region
      %13 = vsyncadd [#allocation5], 0
      %s15 = sshll.u32 %s0, 4
      %s16 = int_to_ptr.vmem [resolvable:$true] %s15
      %18 = dma.vmem_to_smem %s16, 16, [#allocation2], [#allocation5]
    $region5: #{tpu_custom_call.1} parent=1 // pred_fallthru
      _
    // Predicated region
    $region6: #{tpu_custom_call.1} parent=1 // pred_check
      _
    $region7: #{tpu_custom_call.1} parent=1 // pred_check_branch
      %20 = sbr.rel (0) target = $region9
    $region8: #{tpu_custom_call.1} parent=1 // pred_region
      %22 = vsyncadd [#allocation3], 0
      %s24 = sshll.u32 %s1, 4
      %s25 = int_to_ptr.hbm [resolvable:$true] %s24
      %s26 = sshll.u32 [#allocation6], 4
      %s27 = int_to_ptr.vmem [resolvable:$true] %s26
      %29 = dma.hbm_to_vmem [thread:$0]  %s25, 192, %s27, [#allocation3]
    $region9: #{tpu_custom_call.1} parent=1 // pred_fallthru
      _
    // Predicated region
    $region10: #{tpu_custom_call.1} parent=1 // pred_check
      _
    $region11: #{tpu_custom_call.1} parent=1 // pred_check_branch
      %31 = sbr.rel (0) target = $region13
    $region12: #{tpu_custom_call.1} parent=1 // pred_region
      %33 = dma.done [#allocation5], 16
    $region13: #{tpu_custom_call.1} parent=1 // pred_fallthru
      _
    // Predicated region
    $region14: #{tpu_custom_call.1} parent=1 // pred_check
      _
    $region15: #{tpu_custom_call.1} parent=1 // pred_check_branch
      %35 = sbr.rel (0) target = $region17
    $region16: #{tpu_custom_call.1} parent=1 // pred_region
      %37 = dma.done [#allocation3], 192
    $region17: #{tpu_custom_call.1} parent=1 // pred_fallthru
      _
    %38 = sfence
    %v39 = vld [vmem:[#allocation6] sm:$0xf]
    %v40 = vld [vmem:[#allocation6 + $0x4] sm:$0xf]
    %v41 = vld [vmem:[#allocation6 + $0x8] sm:$0xf]
    %vm42 = vcmp.eq.f32.partialorder %v39, 0.0
    %vm43 = vcmp.eq.f32.partialorder %v40, 0.0
    %vm44 = vcmp.eq.f32.partialorder %v41, 0.0
    %s45 = sld [smem:[#allocation2]]
    %s46 = sld [smem:[#allocation2 + $0x1]]
    %s47 = sld [smem:[#allocation2 + $0x2]]
    %s48 = sld [smem:[#allocation2 + $0x3]]
    %v49 = vmax.f32 %v39, %v40
    %v50 = vmax.f32 %v49, %v41
    %v51 = vmin.f32 %v39, %v40
    %v52 = vmin.f32 %v51, %v41
    %v53 = vsub.f32 %v50, %v52
    %vm54 = vcmp.eq.f32.partialorder %v53, 0.0
    %v55 = vsel %vm54, 1.0, %v53
    %v56 = vrcp.pop %v55
    %v57 = vmul.f32 %v55, %v56
    %v58 = vsub.f32 1.0, %v57
    %v59 = vmul.f32 %v56, %v58
    %v60 = vadd.f32 %v56, %v59
    %vm61 = vweird.f32 %v55
    %vm62 = vweird.f32 %v56
    %vm63 = vmor %vm61, %vm62
    %v64 = vsel %vm63, %v56, %v60
    %v65 = vand.u32 2147483647, %v55
    %vm66 = vcmp.eq.f32.partialorder %v65, 8.507059e+37
    %v67 = vand.u32 %v55, 2147483648
    %v68 = vor.u32 1.1754944e-38, %v67
    %v69 = vsel %vm66, %v68, %v64
    %v70 = vsub.f32 %v50, %v39
    %v71 = vmul.f32 %v70, %v69
    %v72 = vsub.f32 %v50, %v40
    %v73 = vmul.f32 %v72, %v69
    %v74 = vsub.f32 %v50, %v41
    %v75 = vmul.f32 %v74, %v69
    %vm76 = vcmp.eq.f32.partialorder %v50, %v39
    %v77 = vsub.f32 %v75, %v73
    %v78 = vsel %vm76, %v77, 0.0
    %vm79 = vcmp.eq.f32.partialorder %v50, %v40
    %vm80 = vcmp.ne.f32.partialorder %v50, %v39
    %vm81 = vmand %vm79, %vm80
    %v82 = vadd.f32 %v71, 2.0
    %v83 = vsub.f32 %v82, %v75
    %v84 = vsel %vm81, %v83, 0.0
    %vm85 = vcmp.ne.f32.partialorder %v50, %v40
    %vm86 = vmand %vm85, %vm80
    %v87 = vadd.f32 %v73, 4.0
    %v88 = vsub.f32 %v87, %v71
    %v89 = vsel %vm86, %v88, 0.0
    %v90 = vadd.f32 %v78, %v84
    %v91 = vadd.f32 %v90, %v89
    %v92 = vrcp.pop 6.0
    %v93 = vmul.f32 6.0, %v92
    %v94 = vsub.f32 1.0, %v93
    %v95 = vmul.f32 %v92, %v94
    %v96 = vadd.f32 %v92, %v95
    %vm97 = vweird.f32 %v92
    %v98 = vsel %vm97, %v92, %v96
    %v99 = vmul.f32 %v91, %v98
    %v100 = vadd.f32 %v99, 1.0
    %v101 = vfloor.f32 %v100
    %v102 = vsub.f32 %v100, %v101
    %v103 = vstv %s48
    %v104 = vadd.f32 %v102, %v103
    %v105 = vfloor.f32 %v104
    %v106 = vsub.f32 %v104, %v105
    %v107 = vmul.f32 %v106, 6.0
    %v108 = vadd.f32 %v107, 5.0
    %vm109 = vcmp.ge.f32.partialorder %v108, 6.0
    %v110 = vsub.f32 %v108, 6.0
    %v111 = vsel %vm109, %v110, %v108
    %v112 = vsub.f32 4.0, %v111
    %v113 = vmin.f32 %v111, %v112
    %v114 = vmax.f32 %v113, 0.0
    %v115 = vmin.f32 %v114, 1.0
    %v116 = vmul.f32 %v53, %v115
    %v117 = vsub.f32 %v50, %v116
    %v118 = vadd.f32 %v107, 3.0
    %vm119 = vcmp.ge.f32.partialorder %v118, 6.0
    %v120 = vsub.f32 %v118, 6.0
    %v121 = vsel %vm119, %v120, %v118
    %v122 = vsub.f32 4.0, %v121
    %v123 = vmin.f32 %v121, %v122
    %v124 = vmax.f32 %v123, 0.0
    %v125 = vmin.f32 %v124, 1.0
    %v126 = vmul.f32 %v53, %v125
    %v127 = vsub.f32 %v50, %v126
    %v128 = vadd.f32 %v107, 1.0
    %vm129 = vcmp.ge.f32.partialorder %v128, 6.0
    %v130 = vsub.f32 %v128, 6.0
    %v131 = vsel %vm129, %v130, %v128
    %v132 = vsub.f32 4.0, %v131
    %v133 = vmin.f32 %v131, %v132
    %v134 = vmax.f32 %v133, 0.0
    %v135 = vmin.f32 %v134, 1.0
    %v136 = vmul.f32 %v53, %v135
    %v137 = vsub.f32 %v50, %v136
    %v138 = vmul.f32 %v117, 0.2989
    %v139 = vmul.f32 %v127, 0.587
    %v140 = vadd.f32 %v138, %v139
    %v141 = vmul.f32 %v137, 0.114
    %v142 = vadd.f32 %v140, %v141
    %144 = vst [vmem:[#allocation1] ss:$4 sm:$0xff] %v142
    %v145 = vld.sshfl [vmem:[#allocation1] sm:$0xff pattern:$0x73625140]
    %v146 = vld.sshfl [vmem:[#allocation1 + $0x8] sm:$0xff pattern:$0x73625140]
    %vm149 = vcmask 1041408
    %v150 = vsel %vm149, %v145, 0.0
    %v151 = vsel %vm149, %v146, 0.0
    %v152 = vadd.f32 %v150, %v151
    %153 = vadd.xlane.f32.xlu0 %v152
    %v154 = vpop.xlane.xlu0 %153
    %v155 = vmul.f32 %v154, 0.00390625
    %v156 = vstv %s46
    %v157 = vmul.f32 %v156, %v117
    %s158 = ssub.f32 1.0, %s46
    %v159 = vstv %s158
    %v160 = vmul.f32 %v159, %v155
    %v163 = vunpack.c.l.s4 269488144
    %v164 = vunpack.c.0.s8 %v163
    %v165 = vperm.slane %v160, %v164
    %v167 = vadd.f32 %v157, %v165
    %v168 = vmax.f32 %v167, 0.0
    %v169 = vmin.f32 %v168, 1.0
    %v170 = vmul.f32 %v156, %v127
    %v171 = vadd.f32 %v170, %v165
    %v172 = vmax.f32 %v171, 0.0
    %v173 = vmin.f32 %v172, 1.0
    %v174 = vmul.f32 %v156, %v137
    %v175 = vadd.f32 %v174, %v165
    %v176 = vmax.f32 %v175, 0.0
    %v177 = vmin.f32 %v176, 1.0
    %v178 = vstv %s45
    %v179 = vmul.f32 %v169, %v178
    %v180 = vmax.f32 %v179, 0.0
    %v181 = vmin.f32 %v180, 1.0
    %v182 = vmul.f32 %v173, %v178
    %v183 = vmax.f32 %v182, 0.0
    %v184 = vmin.f32 %v183, 1.0
    %v185 = vmul.f32 %v177, %v178
    %v186 = vmax.f32 %v185, 0.0
    %v187 = vmin.f32 %v186, 1.0
    %v188 = vmul.f32 %v181, 0.2989
    %v189 = vmul.f32 %v184, 0.587
    %v190 = vadd.f32 %v188, %v189
    %v191 = vmul.f32 %v187, 0.114
    %v192 = vadd.f32 %v190, %v191
    %v193 = vstv %s47
    %v194 = vmul.f32 %v193, %v181
    %s195 = ssub.f32 1.0, %s47
    %v196 = vstv %s195
    %v197 = vmul.f32 %v196, %v192
    %v198 = vadd.f32 %v194, %v197
    %v199 = vmax.f32 %v198, 0.0
    %v200 = vmin.f32 %v199, 1.0
    %v201 = vmul.f32 %v193, %v184
    %v202 = vadd.f32 %v201, %v197
    %v203 = vmax.f32 %v202, 0.0
    %v204 = vmin.f32 %v203, 1.0
    %v205 = vmul.f32 %v193, %v187
    %v206 = vadd.f32 %v205, %v197
    %v207 = vmax.f32 %v206, 0.0
    %v208 = vmin.f32 %v207, 1.0
    %v209 = vsel %vm42, 0.0, %v200
    %210 = vst [vmem:[#allocation7] sm:$0xf] %v209
    %v211 = vsel %vm43, 0.0, %v204
    %212 = vst [vmem:[#allocation7 + $0x4] sm:$0xf] %v211
    %v213 = vsel %vm44, 0.0, %v208
    %214 = vst [vmem:[#allocation7 + $0x8] sm:$0xf] %v213
    // Predicated region
    $region18: #{tpu_custom_call.1} parent=1 // pred_check
      _
    $region19: #{tpu_custom_call.1} parent=1 // pred_check_branch
      %216 = sbr.rel (0) target = $region21
    $region20: #{tpu_custom_call.1} parent=1 // pred_region
      %218 = vsyncadd [#allocation4], 0
      %s220 = sshll.u32 [#allocation7], 4
      %s221 = int_to_ptr.vmem [resolvable:$true] %s220
      %s222 = sshll.u32 %s2, 4
      %s223 = int_to_ptr.hbm [resolvable:$true] %s222
      %225 = dma.vmem_to_hbm [thread:$0]  %s221, 192, %s223, [#allocation4]
    $region21: #{tpu_custom_call.1} parent=1 // pred_fallthru
      _
    // Predicated region
    $region22: #{tpu_custom_call.1} parent=1 // pred_check
      _
    $region23: #{tpu_custom_call.1} parent=1 // pred_check_branch
      %227 = sbr.rel (0) target = $region25
    $region24: #{tpu_custom_call.1} parent=1 // pred_region
      %229 = dma.done [#allocation4], 192
    $region25: #{tpu_custom_call.1} parent=1 // pred_fallthru
      _
    %230 = vsyncpa [#allocation3], 1
    %231 = vsyncpa [#allocation4], 1
    %232 = vsyncpa [#allocation5], 1

</llo_original>
